<compile_context>
chip_gen: v7x
topology: tpu7x:2x2x1
jax: 0.10.0
libtpu: 0.0.40
codegen_flags: <defaults>
</compile_context>

<pallas_src>
import jax
import jax.numpy as jnp
from jax.experimental import pallas as pl
from jax.experimental.pallas import tpu as pltpu

LANE = 128  # TPU lane width; batch tiles are multiples of this.


def policy_mlp_kernel(xy_ref, w1_ref, b1_ref, w2_ref, b2_ref, w3_ref, b3_ref,
                      out_ref):
    """Fused MLP (2->32->16->4) + log_softmax on one (F, TILE_B) batch tile.

    Layer 1 has a contraction depth of only 2, which would waste the MXU, so it
    is computed as two VPU broadcast-FMAs. Layers 2/3 use the MXU with the
    batch on the non-contracting (lane) side. log_softmax reduces over the 4
    feature rows (sublane axis).
    """
    x0 = xy_ref[0:1, :]                                   # (1, TB)  state_x
    x1 = xy_ref[1:2, :]                                   # (1, TB)  state_y
    w1 = w1_ref[...]                                      # (32, 2)

    # fc1 + relu — VPU broadcast multiply-adds, no MXU.
    h1 = w1[:, 0:1] * x0 + w1[:, 1:2] * x1 + b1_ref[...]  # (32, TB)
    h1 = jnp.maximum(h1, 0.0)

    # fc2 + relu — MXU matmul, lane-dense output.
    h2 = jnp.dot(w2_ref[...], h1, preferred_element_type=jnp.float32)
    h2 = jnp.maximum(h2 + b2_ref[...], 0.0)               # (16, TB)

    # fc3
    logits = jnp.dot(w3_ref[...], h2, preferred_element_type=jnp.float32)
    logits = logits + b3_ref[...]                          # (4, TB)

    # Numerically stable log_softmax over the feature axis (axis 0 here).
    m = jnp.max(logits, axis=0, keepdims=True)
    shifted = logits - m
    lse = jnp.log(jnp.sum(jnp.exp(shifted), axis=0, keepdims=True))
    out_ref[...] = shifted - lse                           # (4, TB)


def policy_model_forward(state_x, state_y, params, *, tile_b=2048):
    """Equivalent of PolicyModel.forward.

    state_x, state_y: (B,) float32
    returns: (B, 4) float32 log-probabilities

    tile_b: batch-tile size (multiple of 128). Default 2048 keeps per-tile VMEM
    well under 1 MiB (safe on v7x's 64 MiB) while amortizing grid overhead; on
    v5e/v6e larger tiles also work but are unnecessary for this mem-bound op.
    """
    assert tile_b % LANE == 0
    w1, b1, w2, b2, w3, b3 = params
    B = state_x.shape[0]

    # Feature-major input (2, B): replaces unsqueeze+cat, batch on lane axis.
    xy = jnp.stack([state_x, state_y], axis=0).astype(jnp.float32)

    # Pad batch to a multiple of the chosen tile.
    b_pad = ((B + LANE - 1) // LANE) * LANE
    tb = min(tile_b, b_pad)
    b_pad = ((b_pad + tb - 1) // tb) * tb
    if b_pad != B:
        xy = jnp.pad(xy, ((0, 0), (0, b_pad - B)))

    grid = (b_pad // tb,)

    def resident(shape):
        # Whole-array block, constant index -> stays in VMEM across the grid.
        return pl.BlockSpec(shape, lambda i: (0, 0))

    out = pl.pallas_call(
        policy_mlp_kernel,
        out_shape=jax.ShapeDtypeStruct((4, b_pad), jnp.float32),
        grid=grid,
        in_specs=[
            pl.BlockSpec((2, tb), lambda i: (0, i)),   # streamed batch tile
            resident(w1.shape), resident(b1.shape),
            resident(w2.shape), resident(b2.shape),
            resident(w3.shape), resident(b3.shape),
        ],
        out_specs=pl.BlockSpec((4, tb), lambda i: (0, i)),
        compiler_params=pltpu.CompilerParams(
            dimension_semantics=("parallel",),          # megacore on v7x
            vmem_limit_bytes=32 * 1024 * 1024,
        ),
    )(xy, w1, b1, w2, b2, w3, b3)

    # Back to the PyTorch-facing (B, 4) layout; drop batch padding.
    return out[:, :B].T


def init_params(key):
    """nn.Linear-style init (uniform +-1/sqrt(fan_in)), PyTorch (out, in) layout.

    Weights: (out_features, in_features); biases: (out_features, 1) so they
    broadcast directly against (out_features, TILE_B) activations.
    """
    def linear(key, fan_in, fan_out):
        kw, kb = jax.random.split(key)
        bound = 1.0 / jnp.sqrt(jnp.float32(fan_in))
        w = jax.random.uniform(kw, (fan_out, fan_in), jnp.float32, -bound, bound)
        b = jax.random.uniform(kb, (fan_out, 1), jnp.float32, -bound, bound)
        return w, b

    k1, k2, k3 = jax.random.split(key, 3)
    w1, b1 = linear(k1, 2, 32)
    w2, b2 = linear(k2, 32, 16)
    w3, b3 = linear(k3, 16, 4)
    return (w1, b1, w2, b2, w3, b3)


def reference_forward(state_x, state_y, params):
    """Pure-JAX reference (row-major, mirrors the PyTorch module)."""
    w1, b1, w2, b2, w3, b3 = params
    x = jnp.stack([state_x, state_y], axis=1)            # (B, 2)
    h1 = jnp.maximum(x @ w1.T + b1[:, 0], 0.0)
    h2 = jnp.maximum(h1 @ w2.T + b2[:, 0], 0.0)
    logits = h2 @ w3.T + b3[:, 0]
    return jax.nn.log_softmax(logits, axis=1)


if __name__ == "__main__":
    key = jax.random.PRNGKey(0)
    kp, kx, ky = jax.random.split(key, 3)
    params = init_params(kp)

    # Small batch (single tile after padding to 128 lanes).
    B = 8
    state_x = jax.random.normal(kx, (B,), jnp.float32)
    state_y = jax.random.normal(ky, (B,), jnp.float32)
    out = jax.block_until_ready(policy_model_forward(state_x, state_y, params))
    ref = reference_forward(state_x, state_y, params)
    assert out.shape == (B, 4)
    assert jnp.allclose(out, ref, atol=1e-5, rtol=1e-5)
    assert jnp.allclose(jnp.sum(jnp.exp(out), axis=1), 1.0, atol=1e-5)

    # Multi-tile path: non-multiple batch + small tile exercises grid + padding.
    B2 = 300
    sx2 = jax.random.normal(kx, (B2,), jnp.float32)
    sy2 = jax.random.normal(ky, (B2,), jnp.float32)
    out2 = jax.block_until_ready(
        policy_model_forward(sx2, sy2, params, tile_b=128))
    ref2 = reference_forward(sx2, sy2, params)
    assert out2.shape == (B2, 4)
    assert jnp.allclose(out2, ref2, atol=1e-5, rtol=1e-5)

    print("KERNEL_OK")
</pallas_src>

<mosaic_0001>
module attributes {stable_mosaic.version = 11 : i64} {
  func.func @policy_mlp_kernel(%arg0: i32, %arg1: memref<2x128xf32, #tpu.memory_space<vmem>>, %arg2: memref<32x2xf32, #tpu.memory_space<vmem>>, %arg3: memref<32x1xf32, #tpu.memory_space<vmem>>, %arg4: memref<16x32xf32, #tpu.memory_space<vmem>>, %arg5: memref<16x1xf32, #tpu.memory_space<vmem>>, %arg6: memref<4x16xf32, #tpu.memory_space<vmem>>, %arg7: memref<4x1xf32, #tpu.memory_space<vmem>>, %arg8: memref<4x128xf32, #tpu.memory_space<vmem>>) attributes {dimension_semantics = [#tpu.dimension_semantics<parallel>], iteration_bounds = array<i64: 1>, scalar_prefetch = 0 : i64, scratch_operands = 0 : i64, tpu.core_type = #tpu.core_type<tc>, window_params = [{transform_indices = @transform_0, window_bounds = array<i64: 2, 128>}, {pipeline_mode = #tpu.pipeline_mode<synchronous>, transform_indices = @transform_1, window_bounds = array<i64: 32, 2>}, {pipeline_mode = #tpu.pipeline_mode<synchronous>, transform_indices = @transform_2, window_bounds = array<i64: 32, 1>}, {pipeline_mode = #tpu.pipeline_mode<synchronous>, transform_indices = @transform_3, window_bounds = array<i64: 16, 32>}, {pipeline_mode = #tpu.pipeline_mode<synchronous>, transform_indices = @transform_4, window_bounds = array<i64: 16, 1>}, {pipeline_mode = #tpu.pipeline_mode<synchronous>, transform_indices = @transform_5, window_bounds = array<i64: 4, 16>}, {pipeline_mode = #tpu.pipeline_mode<synchronous>, transform_indices = @transform_6, window_bounds = array<i64: 4, 1>}, {transform_indices = @transform_7, window_bounds = array<i64: 4, 128>}]} {
    %c0 = arith.constant 0 : index
    %c0_0 = arith.constant 0 : index
    %0 = vector.load %arg1[%c0, %c0_0] : memref<2x128xf32, #tpu.memory_space<vmem>>, vector<1x128xf32>
    %c1 = arith.constant 1 : index
    %c0_1 = arith.constant 0 : index
    %1 = vector.load %arg1[%c1, %c0_1] : memref<2x128xf32, #tpu.memory_space<vmem>>, vector<1x128xf32>
    %c0_2 = arith.constant 0 : index
    %c0_3 = arith.constant 0 : index
    %2 = vector.load %arg2[%c0_2, %c0_3] : memref<32x2xf32, #tpu.memory_space<vmem>>, vector<32x2xf32>
    %3 = vector.extract_strided_slice %2 {offsets = [0, 0], sizes = [32, 1], strides = [1, 1]} : vector<32x2xf32> to vector<32x1xf32>
    %4 = vector.broadcast %3 : vector<32x1xf32> to vector<32x128xf32>
    %5 = vector.broadcast %0 : vector<1x128xf32> to vector<32x128xf32>
    %6 = arith.mulf %4, %5 : vector<32x128xf32>
    %7 = vector.extract_strided_slice %2 {offsets = [0, 1], sizes = [32, 1], strides = [1, 1]} : vector<32x2xf32> to vector<32x1xf32>
    %8 = vector.broadcast %7 : vector<32x1xf32> to vector<32x128xf32>
    %9 = vector.broadcast %1 : vector<1x128xf32> to vector<32x128xf32>
    %10 = arith.mulf %8, %9 : vector<32x128xf32>
    %11 = arith.addf %6, %10 : vector<32x128xf32>
    %c0_4 = arith.constant 0 : index
    %c0_5 = arith.constant 0 : index
    %12 = vector.load %arg3[%c0_4, %c0_5] : memref<32x1xf32, #tpu.memory_space<vmem>>, vector<32x1xf32>
    %13 = vector.broadcast %12 : vector<32x1xf32> to vector<32x128xf32>
    %14 = arith.addf %11, %13 : vector<32x128xf32>
    %cst = arith.constant 0.000000e+00 : f32
    %15 = vector.broadcast %cst : f32 to vector<32x128xf32>
    %16 = arith.maximumf %14, %15 : vector<32x128xf32>
    %c0_6 = arith.constant 0 : index
    %c0_7 = arith.constant 0 : index
    %17 = vector.load %arg4[%c0_6, %c0_7] : memref<16x32xf32, #tpu.memory_space<vmem>>, vector<16x32xf32>
    %cst_8 = arith.constant dense<0.000000e+00> : vector<16x128xf32>
    %18 = tpu.matmul %17, %16, %cst_8 {dimension_numbers = #tpu.dot_dimension_numbers<[1], [0], [0], [1], [0, 0, 1, 1], [], []>} : vector<16x32xf32>, vector<32x128xf32>, vector<16x128xf32> -> vector<16x128xf32>
    %c0_9 = arith.constant 0 : index
    %c0_10 = arith.constant 0 : index
    %19 = vector.load %arg5[%c0_9, %c0_10] : memref<16x1xf32, #tpu.memory_space<vmem>>, vector<16x1xf32>
    %20 = vector.broadcast %19 : vector<16x1xf32> to vector<16x128xf32>
    %21 = arith.addf %18, %20 : vector<16x128xf32>
    %cst_11 = arith.constant 0.000000e+00 : f32
    %22 = vector.broadcast %cst_11 : f32 to vector<16x128xf32>
    %23 = arith.maximumf %21, %22 : vector<16x128xf32>
    %c0_12 = arith.constant 0 : index
    %c0_13 = arith.constant 0 : index
    %24 = vector.load %arg6[%c0_12, %c0_13] : memref<4x16xf32, #tpu.memory_space<vmem>>, vector<4x16xf32>
    %cst_14 = arith.constant dense<0.000000e+00> : vector<4x128xf32>
    %25 = tpu.matmul %24, %23, %cst_14 {dimension_numbers = #tpu.dot_dimension_numbers<[1], [0], [0], [1], [0, 0, 1, 1], [], []>} : vector<4x16xf32>, vector<16x128xf32>, vector<4x128xf32> -> vector<4x128xf32>
    %c0_15 = arith.constant 0 : index
    %c0_16 = arith.constant 0 : index
    %26 = vector.load %arg7[%c0_15, %c0_16] : memref<4x1xf32, #tpu.memory_space<vmem>>, vector<4x1xf32>
    %27 = vector.broadcast %26 : vector<4x1xf32> to vector<4x128xf32>
    %28 = arith.addf %25, %27 : vector<4x128xf32>
    %cst_17 = arith.constant dense<0xFF800000> : vector<128xf32>
    %29 = vector.multi_reduction <maximumf>, %28, %cst_17 [0] : vector<4x128xf32> to vector<128xf32>
    %30 = vector.shape_cast %29 : vector<128xf32> to vector<1x128xf32>
    %31 = vector.broadcast %30 : vector<1x128xf32> to vector<4x128xf32>
    %32 = arith.subf %28, %31 : vector<4x128xf32>
    %33 = math.exp %32 : vector<4x128xf32>
    %cst_18 = arith.constant dense<0.000000e+00> : vector<128xf32>
    %34 = vector.multi_reduction <add>, %33, %cst_18 [0] : vector<4x128xf32> to vector<128xf32>
    %35 = vector.shape_cast %34 : vector<128xf32> to vector<1x128xf32>
    %36 = math.log %35 : vector<1x128xf32>
    %37 = vector.broadcast %36 : vector<1x128xf32> to vector<4x128xf32>
    %38 = arith.subf %32, %37 : vector<4x128xf32>
    %c0_19 = arith.constant 0 : index
    %c0_20 = arith.constant 0 : index
    %39 = vector.load %arg8[%c0_19, %c0_20] : memref<4x128xf32, #tpu.memory_space<vmem>>, vector<4x128xf32>
    tpu.vector_store %arg8[%c0_19, %c0_20], %38 {strides = array<i32>} : memref<4x128xf32, #tpu.memory_space<vmem>>, vector<4x128xf32>,
    return
  }
  func.func @transform_0(%arg0: i32) -> (i32, i32) {
    %c0_i32 = arith.constant 0 : i32
    %c0_i32_0 = arith.constant 0 : i32
    return %c0_i32, %arg0 : i32, i32
  }
  func.func @transform_1(%arg0: i32) -> (i32, i32) {
    %c0_i32 = arith.constant 0 : i32
    %c0_i32_0 = arith.constant 0 : i32
    %c0_i32_1 = arith.constant 0 : i32
    return %c0_i32, %c0_i32_0 : i32, i32
  }
  func.func @transform_2(%arg0: i32) -> (i32, i32) {
    %c0_i32 = arith.constant 0 : i32
    %c0_i32_0 = arith.constant 0 : i32
    %c0_i32_1 = arith.constant 0 : i32
    return %c0_i32, %c0_i32_0 : i32, i32
  }
  func.func @transform_3(%arg0: i32) -> (i32, i32) {
    %c0_i32 = arith.constant 0 : i32
    %c0_i32_0 = arith.constant 0 : i32
    %c0_i32_1 = arith.constant 0 : i32
    return %c0_i32, %c0_i32_0 : i32, i32
  }
  func.func @transform_4(%arg0: i32) -> (i32, i32) {
    %c0_i32 = arith.constant 0 : i32
    %c0_i32_0 = arith.constant 0 : i32
    %c0_i32_1 = arith.constant 0 : i32
    return %c0_i32, %c0_i32_0 : i32, i32
  }
  func.func @transform_5(%arg0: i32) -> (i32, i32) {
    %c0_i32 = arith.constant 0 : i32
    %c0_i32_0 = arith.constant 0 : i32
    %c0_i32_1 = arith.constant 0 : i32
    return %c0_i32, %c0_i32_0 : i32, i32
  }
  func.func @transform_6(%arg0: i32) -> (i32, i32) {
    %c0_i32 = arith.constant 0 : i32
    %c0_i32_0 = arith.constant 0 : i32
    %c0_i32_1 = arith.constant 0 : i32
    return %c0_i32, %c0_i32_0 : i32, i32
  }
  func.func @transform_7(%arg0: i32) -> (i32, i32) {
    %c0_i32 = arith.constant 0 : i32
    %c0_i32_0 = arith.constant 0 : i32
    return %c0_i32, %arg0 : i32, i32
  }
}

</mosaic_0001>

<llo_original>
// kernel: tpu_custom_call.1
$region0: #{tpu_custom_call.1}
  #allocation0 [shape = 'u32[]', space=smem, size = 0x4, offset = 0x4, fixed_abs, tag = 'smem constant byte address 0x4 - core index']
  #allocation1 [shape = 'u32[144,128]{1,0:T(1,128)}', space=vmem, size = 0x12000, scoped, tag = 'internal scratch']
  %s0 = inlined_call_operand.vmem [shape: f32[2,128], index: 0, kind: input, shape index: {}]
  %s1 = inlined_call_operand.vmem [shape: f32[32,2], index: 1, kind: input, shape index: {}]
  %s2 = inlined_call_operand.vmem [shape: f32[32,1], index: 2, kind: input, shape index: {}]
  %s3 = inlined_call_operand.vmem [shape: f32[16,32], index: 3, kind: input, shape index: {}]
  %s4 = inlined_call_operand.vmem [shape: f32[16,1], index: 4, kind: input, shape index: {}]
  %s5 = inlined_call_operand.vmem [shape: f32[4,16], index: 5, kind: input, shape index: {}]
  %s6 = inlined_call_operand.vmem [shape: f32[4,1], index: 6, kind: input, shape index: {}]
  %s7 = inlined_call_operand.hbm [shape: f32[4,128], index: 7, kind: output, shape index: {}]
  %s8 = sld [smem:[#allocation0]]
  $region38: #{tpu_custom_call.1} parent=0
    _
  %s10 = ssub.s32 1, %s8
  %s11 = scalar_select 0, %s10, %s8
  $region1: #{tpu_custom_call.1} parent=0
    #allocation2 [shape = 'u8[2048]{0}', space=vmem, size = 0x800, scoped, tag = 'output window, operand 0, single buffered']
    #allocation3 [shape = 's32[1]{0}', space=sflag, size = 0x4, scoped, tag = 'scoped memory for tpu_custom_call.1']
    %12 = vsyncpa [#allocation3], 0
    // Predicated region
    $region2: #{tpu_custom_call.1} parent=1 // pred_check
      _
    $region3: #{tpu_custom_call.1} parent=1 // pred_check_branch
      %14 = sbr.rel (0) target = $region5
    $region4: #{tpu_custom_call.1} parent=1 // pred_region
      _
    $region5: #{tpu_custom_call.1} parent=1 // pred_fallthru
      _
    // Predicated region
    $region6: #{tpu_custom_call.1} parent=1 // pred_check
      _
    $region7: #{tpu_custom_call.1} parent=1 // pred_check_branch
      %16 = sbr.rel (0) target = $region9
    $region8: #{tpu_custom_call.1} parent=1 // pred_region
      _
    $region9: #{tpu_custom_call.1} parent=1 // pred_fallthru
      _
    // Predicated region
    $region10: #{tpu_custom_call.1} parent=1 // pred_check
      _
    $region11: #{tpu_custom_call.1} parent=1 // pred_check_branch
      %18 = sbr.rel (0) target = $region13
    $region12: #{tpu_custom_call.1} parent=1 // pred_region
      _
    $region13: #{tpu_custom_call.1} parent=1 // pred_fallthru
      _
    // Predicated region
    $region14: #{tpu_custom_call.1} parent=1 // pred_check
      _
    $region15: #{tpu_custom_call.1} parent=1 // pred_check_branch
      %20 = sbr.rel (0) target = $region17
    $region16: #{tpu_custom_call.1} parent=1 // pred_region
      _
    $region17: #{tpu_custom_call.1} parent=1 // pred_fallthru
      _
    // Predicated region
    $region18: #{tpu_custom_call.1} parent=1 // pred_check
      _
    $region19: #{tpu_custom_call.1} parent=1 // pred_check_branch
      %22 = sbr.rel (0) target = $region21
    $region20: #{tpu_custom_call.1} parent=1 // pred_region
      _
    $region21: #{tpu_custom_call.1} parent=1 // pred_fallthru
      _
    // Predicated region
    $region22: #{tpu_custom_call.1} parent=1 // pred_check
      _
    $region23: #{tpu_custom_call.1} parent=1 // pred_check_branch
      %24 = sbr.rel (0) target = $region25
    $region24: #{tpu_custom_call.1} parent=1 // pred_region
      _
    $region25: #{tpu_custom_call.1} parent=1 // pred_fallthru
      _
    // Predicated region
    $region26: #{tpu_custom_call.1} parent=1 // pred_check
      _
    $region27: #{tpu_custom_call.1} parent=1 // pred_check_branch
      %26 = sbr.rel (0) target = $region29
    $region28: #{tpu_custom_call.1} parent=1 // pred_region
      _
    $region29: #{tpu_custom_call.1} parent=1 // pred_fallthru
      _
    %v27 = vld [vmem:[%s0] sm:$0x1]
    %v28 = vld [vmem:[%s0 + $0x1] sm:$0x1]
    %v29 = vld [vmem:[%s1] sm:$0xff]
    %v30 = vld [vmem:[%s1 + $0x8] sm:$0xff]
    %v31 = vld [vmem:[%s1 + $0x10] sm:$0xff]
    %v32 = vld [vmem:[%s1 + $0x18] sm:$0xff]
    %34 = vset.pattern.permute.xlu0 0
    %35 = vperm.xlu0 %34, %v29
    %v36 = vpop.permute.xlu0 %35
    %39 = vset.pattern.permute.xlu0 0
    %40 = vperm.xlu0 %39, %v30
    %v41 = vpop.permute.xlu0 %40
    %44 = vset.pattern.permute.xlu0 0
    %45 = vperm.xlu0 %44, %v31
    %v46 = vpop.permute.xlu0 %45
    %49 = vset.pattern.permute.xlu0 0
    %50 = vperm.xlu0 %49, %v32
    %v51 = vpop.permute.xlu0 %50
    %v53 = vlaneseq
    %v54 = vshrl.u32 %v53, 7
    %v55 = vsub.s32 0, %v54
    %v56 = vrot.slane %v27, %v55
    %v57 = vmul.f32 %v36, %v56
    %v58 = vmul.f32 %v41, %v56
    %v59 = vmul.f32 %v46, %v56
    %v60 = vmul.f32 %v51, %v56
    %61 = vset.pattern.permute.xlu0 1
    %62 = vperm.xlu0 %61, %v29
    %v63 = vpop.permute.xlu0 %62
    %65 = vset.pattern.permute.xlu0 1
    %66 = vperm.xlu0 %65, %v30
    %v67 = vpop.permute.xlu0 %66
    %69 = vset.pattern.permute.xlu0 1
    %70 = vperm.xlu0 %69, %v31
    %v71 = vpop.permute.xlu0 %70
    %73 = vset.pattern.permute.xlu0 1
    %74 = vperm.xlu0 %73, %v32
    %v75 = vpop.permute.xlu0 %74
    %v77 = vlaneseq
    %v78 = vshrl.u32 %v77, 7
    %v79 = vsub.s32 0, %v78
    %v80 = vrot.slane %v28, %v79
    %v81 = vmul.f32 %v63, %v80
    %v82 = vmul.f32 %v67, %v80
    %v83 = vmul.f32 %v71, %v80
    %v84 = vmul.f32 %v75, %v80
    %v85 = vadd.f32 %v57, %v81
    %v86 = vadd.f32 %v58, %v82
    %v87 = vadd.f32 %v59, %v83
    %v88 = vadd.f32 %v60, %v84
    %v89 = vld [vmem:[%s2] sm:$0xff]
    %v90 = vld [vmem:[%s2 + $0x8] sm:$0xff]
    %v91 = vld [vmem:[%s2 + $0x10] sm:$0xff]
    %v92 = vld [vmem:[%s2 + $0x18] sm:$0xff]
    %94 = vset.pattern.permute.xlu0 0
    %95 = vperm.xlu0 %94, %v89
    %v96 = vpop.permute.xlu0 %95
    %99 = vset.pattern.permute.xlu0 0
    %100 = vperm.xlu0 %99, %v90
    %v101 = vpop.permute.xlu0 %100
    %104 = vset.pattern.permute.xlu0 0
    %105 = vperm.xlu0 %104, %v91
    %v106 = vpop.permute.xlu0 %105
    %109 = vset.pattern.permute.xlu0 0
    %110 = vperm.xlu0 %109, %v92
    %v111 = vpop.permute.xlu0 %110
    %v113 = vadd.f32 %v85, %v96
    %v114 = vadd.f32 %v86, %v101
    %v115 = vadd.f32 %v87, %v106
    %v116 = vadd.f32 %v88, %v111
    %v117 = vmax.f32 %v113, 0.0
    %v118 = vmax.f32 %v114, 0.0
    %v119 = vmax.f32 %v115, 0.0
    %v120 = vmax.f32 %v116, 0.0
    %v121 = vld [vmem:[%s3] sm:$0xff]
    %v122 = vld [vmem:[%s3 + $0x8] sm:$0xff]
    %v123 = vld [vmem:[%s4] sm:$0xff]
    %v124 = vld [vmem:[%s4 + $0x8] sm:$0xff]
    %126 = vset.pattern.permute.xlu0 0
    %127 = vperm.xlu0 %126, %v123
    %v128 = vpop.permute.xlu0 %127
    %131 = vset.pattern.permute.xlu0 0
    %132 = vperm.xlu0 %131, %v124
    %v133 = vpop.permute.xlu0 %132
    %vm135 = vcmask 261120
    %v137 = vsel %vm135, %v121, 0
    %v140 = vsel %vm135, %v122, 0
    %142 = vmatprep.subr.mxu0 0.0
    %143 = vmatpush1.msra.mxu0 %v117
    %144 = vmatprep.subr.mxu0 0.0
    %145 = vmatpush1.msra.mxu0 %v118
    %146 = vmatprep.subr.mxu0 0.0
    %147 = vmatpush1.msra.mxu0 %v119
    %148 = vmatprep.subr.mxu0 0.0
    %149 = vmatpush1.msra.mxu0 %v120
    %150 = vmatprep.subr.mxu0 0.0
    %151 = vmatpush1.msra.mxu0 0.0
    %152 = vmatprep.subr.mxu0 0.0
    %153 = vmatpush1.msra.mxu0 0.0
    %154 = vmatprep.subr.mxu0 0.0
    %155 = vmatpush1.msra.mxu0 0.0
    %156 = vmatprep.subr.mxu0 0.0
    %157 = vmatpush1.msra.mxu0 0.0
    %158 = vmatprep.subr.mxu0 0.0
    %159 = vmatpush1.msra.mxu0 0.0
    %160 = vmatprep.subr.mxu0 0.0
    %161 = vmatpush1.msra.mxu0 0.0
    %162 = vmatprep.subr.mxu0 0.0
    %163 = vmatpush1.msra.mxu0 0.0
    %164 = vmatprep.subr.mxu0 0.0
    %165 = vmatpush1.msra.mxu0 0.0
    %166 = vmatprep.subr.mxu0 0.0
    %167 = vmatpush1.msra.mxu0 0.0
    %168 = vmatprep.subr.mxu0 0.0
    %169 = vmatpush1.msra.mxu0 0.0
    %170 = vmatprep.subr.mxu0 0.0
    %171 = vmatpush1.msra.mxu0 0.0
    %172 = vmatprep.subr.mxu0 0.0
    %173 = vmatpush1.msra.mxu0 0.0
    %174 = vmatprep.subr.mxu0 0.0
    %175 = vmatpush1.msra.mxu0 0.0
    %176 = vmatprep.subr.mxu0 0.0
    %177 = vmatpush1.msra.mxu0 0.0
    %178 = vmatprep.subr.mxu0 0.0
    %179 = vmatpush1.msra.mxu0 0.0
    %180 = vmatprep.subr.mxu0 0.0
    %181 = vmatpush1.msra.mxu0 0.0
    %182 = vmatprep.subr.mxu0 0.0
    %183 = vmatpush1.msra.mxu0 0.0
    %184 = vmatprep.subr.mxu0 0.0
    %185 = vmatpush1.msra.mxu0 0.0
    %186 = vmatprep.subr.mxu0 0.0
    %187 = vmatpush1.msra.mxu0 0.0
    %188 = vmatprep.subr.mxu0 0.0
    %189 = vmatpush1.msra.mxu0 0.0
    %190 = vmatprep.subr.mxu0 0.0
    %191 = vmatpush1.msra.mxu0 0.0
    %192 = vmatprep.subr.mxu0 0.0
    %193 = vmatpush1.msra.mxu0 0.0
    %194 = vmatprep.subr.mxu0 0.0
    %195 = vmatpush1.msra.mxu0 0.0
    %196 = vmatprep.subr.mxu0 0.0
    %197 = vmatpush1.msra.mxu0 0.0
    %198 = vmatprep.subr.mxu0 0.0
    %199 = vmatpush1.msra.mxu0 0.0
    %200 = vmatprep.subr.mxu0 0.0
    %201 = vmatpush1.msra.mxu0 0.0
    %202 = vmatprep.subr.mxu0 0.0
    %203 = vmatpush1.msra.mxu0 0.0
    %204 = vmatprep.subr.mxu0 0.0
    %205 = vmatpush1.msra.mxu0 0.0
    %206 = vmatprep.mubr.f32.mxu0 0.0
    %207 = vmatmul.mubr.f32.gmra.mrb[0].mxu0 %v137
    %v208 = vpop.f32.mrb[0].mxu0
    %v209 = vadd.f32 %v128, %v208
    %v210 = vpop.f32.mrb[0].mxu0
    %211 = vmatprep.mubr.f32.mxu0 0.0
    %212 = vmatmul.mubr.f32.gmra.mrb[0].mxu0 %v140
    %v213 = vpop.f32.mrb[0].mxu0
    %v214 = vadd.f32 %v133, %v213
    %v215 = vpop.f32.mrb[0].mxu0
    %216 = vdwg.mxu0
    %v217 = vmax.f32 %v209, 0.0
    %v218 = vmax.f32 %v214, 0.0
    %v219 = vld [vmem:[%s5] sm:$0xf]
    %v220 = vld [vmem:[%s6] sm:$0xf]
    %222 = vset.pattern.permute.xlu0 0
    %223 = vperm.xlu0 %222, %v220
    %v224 = vpop.permute.xlu0 %223
    %vm226 = vcmask 130048
    %v228 = vsel %vm226, %v219, 0
    %230 = vmatprep.subr.mxu0 0.0
    %231 = vmatpush1.msra.mxu0 %v217
    %232 = vmatprep.subr.mxu0 0.0
    %233 = vmatpush1.msra.mxu0 %v218
    %234 = vmatprep.subr.mxu0 0.0
    %235 = vmatpush1.msra.mxu0 0.0
    %236 = vmatprep.subr.mxu0 0.0
    %237 = vmatpush1.msra.mxu0 0.0
    %238 = vmatprep.subr.mxu0 0.0
    %239 = vmatpush1.msra.mxu0 0.0
    %240 = vmatprep.subr.mxu0 0.0
    %241 = vmatpush1.msra.mxu0 0.0
    %242 = vmatprep.subr.mxu0 0.0
    %243 = vmatpush1.msra.mxu0 0.0
    %244 = vmatprep.subr.mxu0 0.0
    %245 = vmatpush1.msra.mxu0 0.0
    %246 = vmatprep.subr.mxu0 0.0
    %247 = vmatpush1.msra.mxu0 0.0
    %248 = vmatprep.subr.mxu0 0.0
    %249 = vmatpush1.msra.mxu0 0.0
    %250 = vmatprep.subr.mxu0 0.0
    %251 = vmatpush1.msra.mxu0 0.0
    %252 = vmatprep.subr.mxu0 0.0
    %253 = vmatpush1.msra.mxu0 0.0
    %254 = vmatprep.subr.mxu0 0.0
    %255 = vmatpush1.msra.mxu0 0.0
    %256 = vmatprep.subr.mxu0 0.0
    %257 = vmatpush1.msra.mxu0 0.0
    %258 = vmatprep.subr.mxu0 0.0
    %259 = vmatpush1.msra.mxu0 0.0
    %260 = vmatprep.subr.mxu0 0.0
    %261 = vmatpush1.msra.mxu0 0.0
    %262 = vmatprep.subr.mxu0 0.0
    %263 = vmatpush1.msra.mxu0 0.0
    %264 = vmatprep.subr.mxu0 0.0
    %265 = vmatpush1.msra.mxu0 0.0
    %266 = vmatprep.subr.mxu0 0.0
    %267 = vmatpush1.msra.mxu0 0.0
    %268 = vmatprep.subr.mxu0 0.0
    %269 = vmatpush1.msra.mxu0 0.0
    %270 = vmatprep.subr.mxu0 0.0
    %271 = vmatpush1.msra.mxu0 0.0
    %272 = vmatprep.subr.mxu0 0.0
    %273 = vmatpush1.msra.mxu0 0.0
    %274 = vmatprep.subr.mxu0 0.0
    %275 = vmatpush1.msra.mxu0 0.0
    %276 = vmatprep.subr.mxu0 0.0
    %277 = vmatpush1.msra.mxu0 0.0
    %278 = vmatprep.subr.mxu0 0.0
    %279 = vmatpush1.msra.mxu0 0.0
    %280 = vmatprep.subr.mxu0 0.0
    %281 = vmatpush1.msra.mxu0 0.0
    %282 = vmatprep.subr.mxu0 0.0
    %283 = vmatpush1.msra.mxu0 0.0
    %284 = vmatprep.subr.mxu0 0.0
    %285 = vmatpush1.msra.mxu0 0.0
    %286 = vmatprep.subr.mxu0 0.0
    %287 = vmatpush1.msra.mxu0 0.0
    %288 = vmatprep.subr.mxu0 0.0
    %289 = vmatpush1.msra.mxu0 0.0
    %290 = vmatprep.subr.mxu0 0.0
    %291 = vmatpush1.msra.mxu0 0.0
    %292 = vmatprep.subr.mxu0 0.0
    %293 = vmatpush1.msra.mxu0 0.0
    %294 = vmatprep.mubr.f32.mxu0 0.0
    %295 = vmatmul.mubr.f32.gmra.mrb[0].mxu0 %v228
    %v296 = vpop.f32.mrb[0].mxu0
    %v297 = vadd.f32 %v224, %v296
    %v298 = vpop.f32.mrb[0].mxu0
    %299 = vdwg.mxu0
    %vm300 = vcmask 1043456
    %v301 = vsel %vm300, %v297, -inf
    %v302 = vrot.slane %v301, 4
    %v303 = vmax.f32 %v301, %v302
    %v304 = vrot.slane %v303, 2
    %v305 = vmax.f32 %v303, %v304
    %v306 = vrot.slane %v305, 1
    %v307 = vmax.f32 %v305, %v306
    %v308 = vsub.f32 %v297, %v307
    %v309 = vmul.f32 %v308, 1.442695
    %v310 = vpow.pop %v309
    %v311 = vsel %vm300, %v310, 0.0
    %v312 = vrot.slane %v311, 4
    %v313 = vadd.f32 %v311, %v312
    %v314 = vrot.slane %v313, 2
    %v315 = vadd.f32 %v313, %v314
    %v316 = vrot.slane %v315, 1
    %v317 = vadd.f32 %v315, %v316
    %v318 = vlog2.pop %v317
    %v319 = vmul.f32 %v318, 0.6931472
    %v320 = vsub.f32 %v308, %v319
    %321 = vst [vmem:[#allocation2] sm:$0xf] %v320
    // Predicated region
    $region30: #{tpu_custom_call.1} parent=1 // pred_check
      _
    $region31: #{tpu_custom_call.1} parent=1 // pred_check_branch
      %323 = sbr.rel (0) target = $region33
    $region32: #{tpu_custom_call.1} parent=1 // pred_region
      %s325 = ssub.s32 64, 64
      %326 = vsyncadd [#allocation3], %s325
      %s328 = sshll.u32 [#allocation2], 4
      %s329 = int_to_ptr.vmem [resolvable:$true] %s328
      %331 = dma.vmem_to_hbm [thread:$0]  %s329, 64, %s7, [#allocation3]
    $region33: #{tpu_custom_call.1} parent=1 // pred_fallthru
      _
    // Predicated region
    $region34: #{tpu_custom_call.1} parent=1 // pred_check
      _
    $region35: #{tpu_custom_call.1} parent=1 // pred_check_branch
      %333 = sbr.rel (0) target = $region37
    $region36: #{tpu_custom_call.1} parent=1 // pred_region
      %334 = dma.done [#allocation3], 64
    $region37: #{tpu_custom_call.1} parent=1 // pred_fallthru
      _
    %335 = vsyncpa [#allocation3], 1

</llo_original>
